<compile_context>
chip_gen: v6e
topology: v6e:2x2x1
jax: 0.10.0
libtpu: 0.0.40
codegen_flags: <defaults>
</compile_context>

<pallas_src>
import functools

import jax
import jax.numpy as jnp
from jax import lax
from jax.experimental import pallas as pl
from jax.experimental.pallas import tpu as pltpu

LEAKY_SLOPE = 0.2
BN_EPS = 1e-5


def _round_up(x, m):
    return (x + m - 1) // m * m


# ---------------------------------------------------------------------------
# Phase 1: tiled GEMM (bf16 in, f32 acc) + per-M-tile partial channel stats.
# grid = (num_m, num_k); K axis last ("arbitrary"), M axis "parallel" (distinct
# output blocks per M tile -> safe to shard across TensorCores on v7x).
# stat_ref is an (8, Cpad) slab per M tile: row 0 = sum, row 1 = sum of squares.
# ---------------------------------------------------------------------------
def _gemm_stats_kernel(p_ref, w_ref, conv_ref, stat_ref, acc_ref):
    k = pl.program_id(1)
    nk = pl.num_programs(1)

    @pl.when(k == 0)
    def _init_acc():
        acc_ref[...] = jnp.zeros_like(acc_ref)

    acc_ref[...] += jnp.dot(p_ref[...], w_ref[...],
                            preferred_element_type=jnp.float32)

    @pl.when(k == nk - 1)
    def _finalize_tile():
        conv = acc_ref[...]
        conv_ref[...] = conv
        # XLU sublane reductions overlap with the MXU work of the next tile.
        stat_ref[...] = jnp.zeros_like(stat_ref)
        stat_ref[0:1, :] = jnp.sum(conv, axis=0, keepdims=True)
        stat_ref[1:2, :] = jnp.sum(conv * conv, axis=0, keepdims=True)


# ---------------------------------------------------------------------------
# Phase 2: apply folded BN (per-channel scale/shift) + LeakyReLU per M-tile.
# ---------------------------------------------------------------------------
def _normalize_kernel(conv_ref, a_ref, c_ref, o_ref):
    y = conv_ref[...] * a_ref[...] + c_ref[...]          # one FMA per element
    o_ref[...] = jnp.where(y > 0, y, LEAKY_SLOPE * y).astype(o_ref.dtype)


@functools.partial(jax.jit, static_argnames=("stride", "padding"))
def down_conv_block(x_nchw, weight, bias, gamma, beta, *, stride=2, padding=1):
    """x_nchw: (N, Cin, H, W); weight: (Cout, Cin, KH, KW); PyTorch conventions.

    `bias` is accepted for API parity but not used: it cancels exactly under the
    BatchNorm mean subtraction, so adding it is pure wasted work.
    """
    del bias
    N, Cin, H, W = x_nchw.shape
    Cout, _, KH, KW = weight.shape
    Ho = (H + 2 * padding - KH) // stride + 1
    Wo = (W + 2 * padding - KW) // stride + 1
    M = N * Ho * Wo
    K = KH * KW * Cin

    # --- glue: NCHW -> NHWC, zero-pad, im2col (one GEMM row per output pixel) ---
    x = jnp.transpose(x_nchw, (0, 2, 3, 1))
    xp = jnp.pad(x, ((0, 0), (padding, padding), (padding, padding), (0, 0)))
    taps = []
    for kh in range(KH):
        for kw in range(KW):
            taps.append(xp[:, kh:kh + stride * Ho:stride,
                           kw:kw + stride * Wo:stride, :])
    patches = jnp.stack(taps, axis=3).reshape(M, K)          # (M, KH*KW*Cin)

    # weight (Cout, Cin, KH, KW) -> (KH, KW, Cin, Cout) -> (K, Cout) to match patches
    w2d = jnp.transpose(weight, (2, 3, 1, 0)).reshape(K, Cout)

    # --- tiling / padding ---
    C_pad = _round_up(Cout, 128)                    # lane-dense output stores
    TM = min(512, _round_up(M, 8))                  # ~512 rows/step near HBM roofline
    M_pad = _round_up(M, TM)
    if K <= 512:
        TK, K_pad = K, K                            # single K tile (full dim)
    else:
        TK = 512                                    # MXU-native contraction depth
        K_pad = _round_up(K, TK)
    num_m = M_pad // TM
    num_k = K_pad // TK

    # bf16 MXU inputs (f32 accumulation); padding rows/cols are zero so they
    # contribute nothing to the GEMM or the channel statistics.
    patches = jnp.pad(patches, ((0, M_pad - M), (0, K_pad - K))).astype(jnp.bfloat16)
    w2d = jnp.pad(w2d, ((0, K_pad - K), (0, C_pad - Cout))).astype(jnp.bfloat16)

    # --- phase 1: GEMM + per-tile partial channel stats ---
    conv_out, stats = pl.pallas_call(
        _gemm_stats_kernel,
        out_shape=(
            jax.ShapeDtypeStruct((M_pad, C_pad), jnp.float32),
            jax.ShapeDtypeStruct((num_m * 8, C_pad), jnp.float32),
        ),
        grid=(num_m, num_k),
        in_specs=[
            pl.BlockSpec((TM, TK), lambda i, k: (i, k)),
            pl.BlockSpec((TK, C_pad), lambda i, k: (k, 0)),
        ],
        out_specs=(
            pl.BlockSpec((TM, C_pad), lambda i, k: (i, 0)),
            pl.BlockSpec((8, C_pad), lambda i, k: (i, 0)),
        ),
        scratch_shapes=[pltpu.VMEM((TM, C_pad), jnp.float32)],
        compiler_params=pltpu.CompilerParams(
            dimension_semantics=("parallel", "arbitrary"),
            vmem_limit_bytes=32 * 1024 * 1024),
    )(patches, w2d)

    # --- fold BN into per-channel scale/shift (tiny O(num_m * C) wrapper math) ---
    stats = stats.reshape(num_m, 8, C_pad)
    ch_sum = jnp.sum(stats[:, 0, :], axis=0)                 # (C_pad,)
    ch_sq = jnp.sum(stats[:, 1, :], axis=0)                  # (C_pad,)
    inv_m = 1.0 / M                                          # padded rows are zero
    mean = ch_sum * inv_m
    var = ch_sq * inv_m - mean * mean                        # biased var (BN training)
    g_pad = jnp.pad(gamma.astype(jnp.float32), (0, C_pad - Cout))
    b_pad = jnp.pad(beta.astype(jnp.float32), (0, C_pad - Cout))
    a = (g_pad * lax.rsqrt(var + BN_EPS)).reshape(1, C_pad)
    c = (b_pad - mean * a[0]).reshape(1, C_pad)

    # --- phase 2: normalize + LeakyReLU (in place over the conv buffer) ---
    out = pl.pallas_call(
        _normalize_kernel,
        out_shape=jax.ShapeDtypeStruct((M_pad, C_pad), jnp.float32),
        grid=(num_m,),
        in_specs=[
            pl.BlockSpec((TM, C_pad), lambda i: (i, 0)),
            pl.BlockSpec((1, C_pad), lambda i: (0, 0)),
            pl.BlockSpec((1, C_pad), lambda i: (0, 0)),
        ],
        out_specs=pl.BlockSpec((TM, C_pad), lambda i: (i, 0)),
        input_output_aliases={0: 0},
        compiler_params=pltpu.CompilerParams(
            dimension_semantics=("parallel",),
            vmem_limit_bytes=32 * 1024 * 1024),
    )(conv_out, a, c)

    # (M_pad, C_pad) -> crop padding -> (N, Ho, Wo, Cout) -> NCHW
    out = out[:M, :Cout].reshape(N, Ho, Wo, Cout)
    return jnp.transpose(out, (0, 3, 1, 2))


# ---------------------------------------------------------------------------
# Pure-JAX reference (exact module semantics).  cast_bf16=True rounds the conv
# inputs to bf16 (what the kernel feeds the MXU) for a tight apples-to-apples check.
# ---------------------------------------------------------------------------
def reference(x, w, b, g, beta, *, cast_bf16=False):
    if cast_bf16:
        x = x.astype(jnp.bfloat16).astype(jnp.float32)
        w = w.astype(jnp.bfloat16).astype(jnp.float32)
    conv = lax.conv_general_dilated(
        x, w, window_strides=(2, 2), padding=((1, 1), (1, 1)),
        dimension_numbers=("NCHW", "OIHW", "NCHW"),
        precision=lax.Precision.HIGHEST) + b[None, :, None, None]
    mean = conv.mean(axis=(0, 2, 3), keepdims=True)
    var = ((conv - mean) ** 2).mean(axis=(0, 2, 3), keepdims=True)
    y = (conv - mean) / jnp.sqrt(var + BN_EPS)
    y = y * g[None, :, None, None] + beta[None, :, None, None]
    return jnp.where(y > 0, y, LEAKY_SLOPE * y)


if __name__ == "__main__":
    N, Cin, H, W = 2, 4, 16, 16
    Cout, KH, KW = 8, 3, 3

    key = jax.random.PRNGKey(0)
    kx, kw_, kb, kg, kbeta = jax.random.split(key, 5)

    x = jax.random.normal(kx, (N, Cin, H, W), dtype=jnp.float32)
    # Conv2d params (kaiming-uniform-ish deterministic init)
    fan_in = Cin * KH * KW
    bound = 1.0 / (fan_in ** 0.5)
    weight = jax.random.uniform(kw_, (Cout, Cin, KH, KW), jnp.float32, -bound, bound)
    bias = jax.random.uniform(kb, (Cout,), jnp.float32, -bound, bound)
    # BatchNorm2d affine params (perturbed from defaults to exercise the path)
    gamma = 1.0 + 0.1 * jax.random.normal(kg, (Cout,), dtype=jnp.float32)
    beta = 0.1 * jax.random.normal(kbeta, (Cout,), dtype=jnp.float32)

    out = down_conv_block(x, weight, bias, gamma, beta)
    out = jax.block_until_ready(out)

    assert out.shape == (N, Cout, H // 2, W // 2), out.shape

    # Tight check vs. a reference computed with the same bf16-rounded conv inputs.
    ref_matched = reference(x, weight, bias, gamma, beta, cast_bf16=True)
    err_m = float(jnp.max(jnp.abs(out - ref_matched)))
    assert jnp.allclose(out, ref_matched, atol=1e-3, rtol=1e-3), err_m

    # Loose check vs. exact f32 module semantics (bf16 MXU inputs => ~1e-3 abs error).
    ref_exact = reference(x, weight, bias, gamma, beta, cast_bf16=False)
    err_e = float(jnp.max(jnp.abs(out - ref_exact)))
    assert jnp.allclose(out, ref_exact, atol=5e-2, rtol=5e-2), err_e

    print("KERNEL_OK")
</pallas_src>

<mosaic_0001>
module attributes {stable_mosaic.version = 11 : i64} {
  func.func @_gemm_stats_kernel(%arg0: i32, %arg1: i32, %arg2: memref<128x36xbf16, #tpu.memory_space<vmem>>, %arg3: memref<36x128xbf16, #tpu.memory_space<vmem>>, %arg4: memref<128x128xf32, #tpu.memory_space<vmem>>, %arg5: memref<8x128xf32, #tpu.memory_space<vmem>>, %arg6: memref<128x128xf32, #tpu.memory_space<vmem>>) attributes {dimension_semantics = [#tpu.dimension_semantics<parallel>, #tpu.dimension_semantics<arbitrary>], iteration_bounds = array<i64: 1, 1>, scalar_prefetch = 0 : i64, scratch_operands = 1 : i64, tpu.core_type = #tpu.core_type<tc>, window_params = [{transform_indices = @transform_0, window_bounds = array<i64: 128, 36>}, {transform_indices = @transform_1, window_bounds = array<i64: 36, 128>}, {transform_indices = @transform_2, window_bounds = array<i64: 128, 128>}, {transform_indices = @transform_3, window_bounds = array<i64: 8, 128>}]} {
    %c0_i32 = arith.constant 0 : i32
    %0 = arith.cmpi eq, %arg1, %c0_i32 : i32
    %1 = arith.extui %0 : i1 to i32
    %c0_i32_0 = arith.constant 0 : i32
    %2 = arith.cmpi ne, %1, %c0_i32_0 : i32
    scf.if %2 {
      %cst_10 = arith.constant 0.000000e+00 : f32
      %12 = vector.broadcast %cst_10 : f32 to vector<128x128xf32>
      %c0_11 = arith.constant 0 : index
      %c0_12 = arith.constant 0 : index
      %13 = vector.load %arg6[%c0_11, %c0_12] : memref<128x128xf32, #tpu.memory_space<vmem>>, vector<128x128xf32>
      tpu.vector_store %arg6[%c0_11, %c0_12], %12 {strides = array<i32>} : memref<128x128xf32, #tpu.memory_space<vmem>>, vector<128x128xf32>,
    } else {
    }
    %c0 = arith.constant 0 : index
    %c0_1 = arith.constant 0 : index
    %3 = vector.load %arg6[%c0, %c0_1] : memref<128x128xf32, #tpu.memory_space<vmem>>, vector<128x128xf32>
    %c0_2 = arith.constant 0 : index
    %c0_3 = arith.constant 0 : index
    %4 = vector.load %arg2[%c0_2, %c0_3] : memref<128x36xbf16, #tpu.memory_space<vmem>>, vector<128x36xbf16>
    %c0_4 = arith.constant 0 : index
    %c0_5 = arith.constant 0 : index
    %5 = vector.load %arg3[%c0_4, %c0_5] : memref<36x128xbf16, #tpu.memory_space<vmem>>, vector<36x128xbf16>
    %cst = arith.constant dense<0.000000e+00> : vector<128x128xf32>
    %6 = tpu.matmul %4, %5, %cst {dimension_numbers = #tpu.dot_dimension_numbers<[1], [0], [0], [1], [0, 0, 1, 1], [], []>} : vector<128x36xbf16>, vector<36x128xbf16>, vector<128x128xf32> -> vector<128x128xf32>
    %7 = arith.addf %3, %6 : vector<128x128xf32>
    %c0_6 = arith.constant 0 : index
    %c0_7 = arith.constant 0 : index
    %8 = vector.load %arg6[%c0_6, %c0_7] : memref<128x128xf32, #tpu.memory_space<vmem>>, vector<128x128xf32>
    tpu.vector_store %arg6[%c0_6, %c0_7], %7 {strides = array<i32>} : memref<128x128xf32, #tpu.memory_space<vmem>>, vector<128x128xf32>,
    %c0_i32_8 = arith.constant 0 : i32
    %9 = arith.cmpi eq, %arg1, %c0_i32_8 : i32
    %10 = arith.extui %9 : i1 to i32
    %c0_i32_9 = arith.constant 0 : i32
    %11 = arith.cmpi ne, %10, %c0_i32_9 : i32
    scf.if %11 {
      %c0_10 = arith.constant 0 : index
      %c0_11 = arith.constant 0 : index
      %12 = vector.load %arg6[%c0_10, %c0_11] : memref<128x128xf32, #tpu.memory_space<vmem>>, vector<128x128xf32>
      %c0_12 = arith.constant 0 : index
      %c0_13 = arith.constant 0 : index
      %13 = vector.load %arg4[%c0_12, %c0_13] : memref<128x128xf32, #tpu.memory_space<vmem>>, vector<128x128xf32>
      tpu.vector_store %arg4[%c0_12, %c0_13], %12 {strides = array<i32>} : memref<128x128xf32, #tpu.memory_space<vmem>>, vector<128x128xf32>,
      %cst_14 = arith.constant 0.000000e+00 : f32
      %14 = vector.broadcast %cst_14 : f32 to vector<8x128xf32>
      %c0_15 = arith.constant 0 : index
      %c0_16 = arith.constant 0 : index
      %15 = vector.load %arg5[%c0_15, %c0_16] : memref<8x128xf32, #tpu.memory_space<vmem>>, vector<8x128xf32>
      tpu.vector_store %arg5[%c0_15, %c0_16], %14 {strides = array<i32>} : memref<8x128xf32, #tpu.memory_space<vmem>>, vector<8x128xf32>,
      %cst_17 = arith.constant dense<0.000000e+00> : vector<128xf32>
      %16 = vector.multi_reduction <add>, %12, %cst_17 [0] : vector<128x128xf32> to vector<128xf32>
      %17 = vector.shape_cast %16 : vector<128xf32> to vector<1x128xf32>
      %c0_18 = arith.constant 0 : index
      %c0_19 = arith.constant 0 : index
      %18 = vector.load %arg5[%c0_18, %c0_19] : memref<8x128xf32, #tpu.memory_space<vmem>>, vector<1x128xf32>
      tpu.vector_store %arg5[%c0_18, %c0_19], %17 {strides = array<i32>} : memref<8x128xf32, #tpu.memory_space<vmem>>, vector<1x128xf32>,
      %19 = arith.mulf %12, %12 : vector<128x128xf32>
      %cst_20 = arith.constant dense<0.000000e+00> : vector<128xf32>
      %20 = vector.multi_reduction <add>, %19, %cst_20 [0] : vector<128x128xf32> to vector<128xf32>
      %21 = vector.shape_cast %20 : vector<128xf32> to vector<1x128xf32>
      %c1 = arith.constant 1 : index
      %c0_21 = arith.constant 0 : index
      %22 = vector.load %arg5[%c1, %c0_21] : memref<8x128xf32, #tpu.memory_space<vmem>>, vector<1x128xf32>
      tpu.vector_store %arg5[%c1, %c0_21], %21 {strides = array<i32>} : memref<8x128xf32, #tpu.memory_space<vmem>>, vector<1x128xf32>,
    } else {
    }
    return
  }
  func.func @transform_0(%arg0: i32, %arg1: i32) -> (i32, i32) {
    %c0_i32 = arith.constant 0 : i32
    return %arg0, %arg1 : i32, i32
  }
  func.func @transform_1(%arg0: i32, %arg1: i32) -> (i32, i32) {
    %c0_i32 = arith.constant 0 : i32
    %c0_i32_0 = arith.constant 0 : i32
    return %arg1, %c0_i32 : i32, i32
  }
  func.func @transform_2(%arg0: i32, %arg1: i32) -> (i32, i32) {
    %c0_i32 = arith.constant 0 : i32
    %c0_i32_0 = arith.constant 0 : i32
    return %arg0, %c0_i32 : i32, i32
  }
  func.func @transform_3(%arg0: i32, %arg1: i32) -> (i32, i32) {
    %c0_i32 = arith.constant 0 : i32
    %c0_i32_0 = arith.constant 0 : i32
    return %arg0, %c0_i32 : i32, i32
  }
}

module attributes {stable_mosaic.version = 11 : i64} {
  func.func @_normalize_kernel(%arg0: i32, %arg1: memref<128x128xf32, #tpu.memory_space<vmem>>, %arg2: memref<1x128xf32, #tpu.memory_space<vmem>>, %arg3: memref<1x128xf32, #tpu.memory_space<vmem>>, %arg4: memref<128x128xf32, #tpu.memory_space<vmem>>) attributes {dimension_semantics = [#tpu.dimension_semantics<parallel>], iteration_bounds = array<i64: 1>, scalar_prefetch = 0 : i64, scratch_operands = 0 : i64, tpu.core_type = #tpu.core_type<tc>, window_params = [{transform_indices = @transform_0, window_bounds = array<i64: 128, 128>}, {pipeline_mode = #tpu.pipeline_mode<synchronous>, transform_indices = @transform_1, window_bounds = array<i64: 1, 128>}, {pipeline_mode = #tpu.pipeline_mode<synchronous>, transform_indices = @transform_2, window_bounds = array<i64: 1, 128>}, {transform_indices = @transform_3, window_bounds = array<i64: 128, 128>}]} {
    %c0 = arith.constant 0 : index
    %c0_0 = arith.constant 0 : index
    %0 = vector.load %arg1[%c0, %c0_0] : memref<128x128xf32, #tpu.memory_space<vmem>>, vector<128x128xf32>
    %c0_1 = arith.constant 0 : index
    %c0_2 = arith.constant 0 : index
    %1 = vector.load %arg2[%c0_1, %c0_2] : memref<1x128xf32, #tpu.memory_space<vmem>>, vector<1x128xf32>
    %2 = vector.broadcast %1 : vector<1x128xf32> to vector<128x128xf32>
    %3 = arith.mulf %0, %2 : vector<128x128xf32>
    %c0_3 = arith.constant 0 : index
    %c0_4 = arith.constant 0 : index
    %4 = vector.load %arg3[%c0_3, %c0_4] : memref<1x128xf32, #tpu.memory_space<vmem>>, vector<1x128xf32>
    %5 = vector.broadcast %4 : vector<1x128xf32> to vector<128x128xf32>
    %6 = arith.addf %3, %5 : vector<128x128xf32>
    %cst = arith.constant 0.000000e+00 : f32
    %7 = vector.broadcast %cst : f32 to vector<128x128xf32>
    %8 = arith.cmpf ogt, %6, %7 : vector<128x128xf32>
    %cst_5 = arith.constant 2.000000e-01 : f32
    %9 = vector.broadcast %cst_5 : f32 to vector<128x128xf32>
    %10 = arith.mulf %9, %6 : vector<128x128xf32>
    %11 = arith.select %8, %6, %10 : vector<128x128xi1>, vector<128x128xf32>
    %c0_6 = arith.constant 0 : index
    %c0_7 = arith.constant 0 : index
    %12 = vector.load %arg4[%c0_6, %c0_7] : memref<128x128xf32, #tpu.memory_space<vmem>>, vector<128x128xf32>
    tpu.vector_store %arg4[%c0_6, %c0_7], %11 {strides = array<i32>} : memref<128x128xf32, #tpu.memory_space<vmem>>, vector<128x128xf32>,
    return
  }
  func.func @transform_0(%arg0: i32) -> (i32, i32) {
    %c0_i32 = arith.constant 0 : i32
    %c0_i32_0 = arith.constant 0 : i32
    return %arg0, %c0_i32 : i32, i32
  }
  func.func @transform_1(%arg0: i32) -> (i32, i32) {
    %c0_i32 = arith.constant 0 : i32
    %c0_i32_0 = arith.constant 0 : i32
    %c0_i32_1 = arith.constant 0 : i32
    return %c0_i32, %c0_i32_0 : i32, i32
  }
  func.func @transform_2(%arg0: i32) -> (i32, i32) {
    %c0_i32 = arith.constant 0 : i32
    %c0_i32_0 = arith.constant 0 : i32
    %c0_i32_1 = arith.constant 0 : i32
    return %c0_i32, %c0_i32_0 : i32, i32
  }
  func.func @transform_3(%arg0: i32) -> (i32, i32) {
    %c0_i32 = arith.constant 0 : i32
    %c0_i32_0 = arith.constant 0 : i32
    return %arg0, %c0_i32 : i32, i32
  }
}

</mosaic_0001>

<llo_original>
// kernel: down_conv_block.3
$region0: #{down_conv_block.3}
  #allocation0 [shape = 'u32[]', space=smem, size = 0x4, offset = 0x4, fixed_abs, tag = 'smem constant byte address 0x4 - core index']
  #allocation1 [shape = 'u32[144,128]{1,0:T(1,128)}', space=vmem, size = 0x12000, scoped, tag = 'internal scratch']
  %s0 = inlined_call_operand.vmem [shape: f32[128,128], index: 0, kind: input, shape index: {}, may-alias: {0,3}]
  %s1 = inlined_call_operand.vmem [shape: f32[1,128], index: 1, kind: input, shape index: {}]
  %s2 = inlined_call_operand.vmem [shape: f32[1,128], index: 2, kind: input, shape index: {}]
  %s3 = inlined_call_operand.vmem [shape: f32[128,128], index: 3, kind: output, shape index: {}, may-alias: {0,3}]
  %s4 = sld [smem:[#allocation0]]
  $region22: #{down_conv_block.3} parent=0
    _
  %s6 = ssub.s32 1, %s4
  %s7 = scalar_select 0, %s6, %s4
  // Predicated region
  $region2: #{down_conv_block.3} parent=0 // pred_check
    _
  $region3: #{down_conv_block.3} parent=0 // pred_check_branch
    %9 = sbr.rel (0) target = $region5
  $region4: #{down_conv_block.3} parent=0 // pred_region
    _
  $region5: #{down_conv_block.3} parent=0 // pred_fallthru
    _
  // Predicated region
  $region6: #{down_conv_block.3} parent=0 // pred_check
    _
  $region7: #{down_conv_block.3} parent=0 // pred_check_branch
    %11 = sbr.rel (0) target = $region9
  $region8: #{down_conv_block.3} parent=0 // pred_region
    _
  $region9: #{down_conv_block.3} parent=0 // pred_fallthru
    _
  // Predicated region
  $region10: #{down_conv_block.3} parent=0 // pred_check
    _
  $region11: #{down_conv_block.3} parent=0 // pred_check_branch
    %13 = sbr.rel (0) target = $region13
  $region12: #{down_conv_block.3} parent=0 // pred_region
    _
  $region13: #{down_conv_block.3} parent=0 // pred_fallthru
    _
  %v14 = vld [vmem:[%s0] sm:$0xff]
  %v15 = vld [vmem:[%s0 + $0x8] sm:$0xff]
  %v16 = vld [vmem:[%s0 + $0x10] sm:$0xff]
  %v17 = vld [vmem:[%s0 + $0x18] sm:$0xff]
  %v18 = vld [vmem:[%s0 + $0x20] sm:$0xff]
  %v19 = vld [vmem:[%s0 + $0x28] sm:$0xff]
  %v20 = vld [vmem:[%s0 + $0x30] sm:$0xff]
  %v21 = vld [vmem:[%s0 + $0x38] sm:$0xff]
  %v22 = vld [vmem:[%s0 + $0x40] sm:$0xff]
  %v23 = vld [vmem:[%s0 + $0x48] sm:$0xff]
  %v24 = vld [vmem:[%s0 + $0x50] sm:$0xff]
  %v25 = vld [vmem:[%s0 + $0x58] sm:$0xff]
  %v26 = vld [vmem:[%s0 + $0x60] sm:$0xff]
  %v27 = vld [vmem:[%s0 + $0x68] sm:$0xff]
  %v28 = vld [vmem:[%s0 + $0x70] sm:$0xff]
  %v29 = vld [vmem:[%s0 + $0x78] sm:$0xff]
  %v30 = vld [vmem:[%s1] sm:$0x1]
  %v32 = vlaneseq
  %v33 = vshrl.u32 %v32, 7
  %v34 = vsub.s32 0, %v33
  %v35 = vrot.slane %v30, %v34
  %v37 = vmul.f32 %v14, %v35
  %v38 = vmul.f32 %v15, %v35
  %v39 = vmul.f32 %v16, %v35
  %v40 = vmul.f32 %v17, %v35
  %v41 = vmul.f32 %v18, %v35
  %v42 = vmul.f32 %v19, %v35
  %v43 = vmul.f32 %v20, %v35
  %v44 = vmul.f32 %v21, %v35
  %v45 = vmul.f32 %v22, %v35
  %v46 = vmul.f32 %v23, %v35
  %v47 = vmul.f32 %v24, %v35
  %v48 = vmul.f32 %v25, %v35
  %v49 = vmul.f32 %v26, %v35
  %v50 = vmul.f32 %v27, %v35
  %v51 = vmul.f32 %v28, %v35
  %v52 = vmul.f32 %v29, %v35
  %v53 = vld [vmem:[%s2] sm:$0x1]
  %v55 = vlaneseq
  %v56 = vshrl.u32 %v55, 7
  %v57 = vsub.s32 0, %v56
  %v58 = vrot.slane %v53, %v57
  %v60 = vadd.f32 %v37, %v58
  %v61 = vadd.f32 %v38, %v58
  %v62 = vadd.f32 %v39, %v58
  %v63 = vadd.f32 %v40, %v58
  %v64 = vadd.f32 %v41, %v58
  %v65 = vadd.f32 %v42, %v58
  %v66 = vadd.f32 %v43, %v58
  %v67 = vadd.f32 %v44, %v58
  %v68 = vadd.f32 %v45, %v58
  %v69 = vadd.f32 %v46, %v58
  %v70 = vadd.f32 %v47, %v58
  %v71 = vadd.f32 %v48, %v58
  %v72 = vadd.f32 %v49, %v58
  %v73 = vadd.f32 %v50, %v58
  %v74 = vadd.f32 %v51, %v58
  %v75 = vadd.f32 %v52, %v58
  %vm76 = vcmp.gt.f32.partialorder %v60, 0.0
  %vm77 = vcmp.gt.f32.partialorder %v61, 0.0
  %vm78 = vcmp.gt.f32.partialorder %v62, 0.0
  %vm79 = vcmp.gt.f32.partialorder %v63, 0.0
  %vm80 = vcmp.gt.f32.partialorder %v64, 0.0
  %vm81 = vcmp.gt.f32.partialorder %v65, 0.0
  %vm82 = vcmp.gt.f32.partialorder %v66, 0.0
  %vm83 = vcmp.gt.f32.partialorder %v67, 0.0
  %vm84 = vcmp.gt.f32.partialorder %v68, 0.0
  %vm85 = vcmp.gt.f32.partialorder %v69, 0.0
  %vm86 = vcmp.gt.f32.partialorder %v70, 0.0
  %vm87 = vcmp.gt.f32.partialorder %v71, 0.0
  %vm88 = vcmp.gt.f32.partialorder %v72, 0.0
  %vm89 = vcmp.gt.f32.partialorder %v73, 0.0
  %vm90 = vcmp.gt.f32.partialorder %v74, 0.0
  %vm91 = vcmp.gt.f32.partialorder %v75, 0.0
  %v92 = vmul.f32 %v60, 0.2
  %v93 = vmul.f32 %v61, 0.2
  %v94 = vmul.f32 %v62, 0.2
  %v95 = vmul.f32 %v63, 0.2
  %v96 = vmul.f32 %v64, 0.2
  %v97 = vmul.f32 %v65, 0.2
  %v98 = vmul.f32 %v66, 0.2
  %v99 = vmul.f32 %v67, 0.2
  %v100 = vmul.f32 %v68, 0.2
  %v101 = vmul.f32 %v69, 0.2
  %v102 = vmul.f32 %v70, 0.2
  %v103 = vmul.f32 %v71, 0.2
  %v104 = vmul.f32 %v72, 0.2
  %v105 = vmul.f32 %v73, 0.2
  %v106 = vmul.f32 %v74, 0.2
  %v107 = vmul.f32 %v75, 0.2
  %v108 = vsel %vm76, %v60, %v92
  %v109 = vsel %vm77, %v61, %v93
  %v110 = vsel %vm78, %v62, %v94
  %v111 = vsel %vm79, %v63, %v95
  %v112 = vsel %vm80, %v64, %v96
  %v113 = vsel %vm81, %v65, %v97
  %v114 = vsel %vm82, %v66, %v98
  %v115 = vsel %vm83, %v67, %v99
  %v116 = vsel %vm84, %v68, %v100
  %v117 = vsel %vm85, %v69, %v101
  %v118 = vsel %vm86, %v70, %v102
  %v119 = vsel %vm87, %v71, %v103
  %v120 = vsel %vm88, %v72, %v104
  %v121 = vsel %vm89, %v73, %v105
  %v122 = vsel %vm90, %v74, %v106
  %v123 = vsel %vm91, %v75, %v107
  %124 = vst [vmem:[%s3] sm:$0xff] %v108
  %125 = vst [vmem:[%s3 + $0x8] sm:$0xff] %v109
  %126 = vst [vmem:[%s3 + $0x10] sm:$0xff] %v110
  %127 = vst [vmem:[%s3 + $0x18] sm:$0xff] %v111
  %128 = vst [vmem:[%s3 + $0x20] sm:$0xff] %v112
  %129 = vst [vmem:[%s3 + $0x28] sm:$0xff] %v113
  %130 = vst [vmem:[%s3 + $0x30] sm:$0xff] %v114
  %131 = vst [vmem:[%s3 + $0x38] sm:$0xff] %v115
  %132 = vst [vmem:[%s3 + $0x40] sm:$0xff] %v116
  %133 = vst [vmem:[%s3 + $0x48] sm:$0xff] %v117
  %134 = vst [vmem:[%s3 + $0x50] sm:$0xff] %v118
  %135 = vst [vmem:[%s3 + $0x58] sm:$0xff] %v119
  %136 = vst [vmem:[%s3 + $0x60] sm:$0xff] %v120
  %137 = vst [vmem:[%s3 + $0x68] sm:$0xff] %v121
  %138 = vst [vmem:[%s3 + $0x70] sm:$0xff] %v122
  %139 = vst [vmem:[%s3 + $0x78] sm:$0xff] %v123
  // Predicated region
  $region14: #{down_conv_block.3} parent=0 // pred_check
    _
  $region15: #{down_conv_block.3} parent=0 // pred_check_branch
    %141 = sbr.rel (0) target = $region17
  $region16: #{down_conv_block.3} parent=0 // pred_region
    _
  $region17: #{down_conv_block.3} parent=0 // pred_fallthru
    _
  // Predicated region
  $region18: #{down_conv_block.3} parent=0 // pred_check
    _
  $region19: #{down_conv_block.3} parent=0 // pred_check_branch
    %143 = sbr.rel (0) target = $region21
  $region20: #{down_conv_block.3} parent=0 // pred_region
    _
  $region21: #{down_conv_block.3} parent=0 // pred_fallthru
    _

// kernel: down_conv_block.2
$region0: #{down_conv_block.2}
  #allocation0 [shape = 'u32[]', space=smem, size = 0x4, offset = 0x4, fixed_abs, tag = 'smem constant byte address 0x4 - core index']
  #allocation1 [shape = 'u32[144,128]{1,0:T(1,128)}', space=vmem, size = 0x12000, scoped, tag = 'internal scratch']
  #allocation2 [shape = 'f32[128,128]{1,0:T(8,128)}', space=vmem, size = 0x10000, scoped, tag = 'scratch operand']
  %s0 = inlined_call_operand.vmem [shape: bf16[128,36], index: 0, kind: input, shape index: {}]
  %s1 = inlined_call_operand.vmem [shape: bf16[36,128], index: 1, kind: input, shape index: {}]
  %s2 = inlined_call_operand.vmem [shape: f32[128,128], index: 2, kind: output, shape index: {0}]
  %s3 = inlined_call_operand.vmem [shape: f32[8,128], index: 3, kind: output, shape index: {1}]
  %4 = xla_tuple %s2, %s3
  %s5 = sld [smem:[#allocation0]]
  $region34: #{down_conv_block.2} parent=0
    _
  %s7 = ssub.s32 1, %s5
  %s8 = scalar_select 0, %s7, %s5
  // Predicated region
  $region2: #{down_conv_block.2} parent=0 // pred_check
    _
  $region3: #{down_conv_block.2} parent=0 // pred_check_branch
    %10 = sbr.rel (0) target = $region5
  $region4: #{down_conv_block.2} parent=0 // pred_region
    _
  $region5: #{down_conv_block.2} parent=0 // pred_fallthru
    _
  // Predicated region
  $region6: #{down_conv_block.2} parent=0 // pred_check
    _
  $region7: #{down_conv_block.2} parent=0 // pred_check_branch
    %12 = sbr.rel (0) target = $region9
  $region8: #{down_conv_block.2} parent=0 // pred_region
    _
  $region9: #{down_conv_block.2} parent=0 // pred_fallthru
    _
  %p14 = scmp.eq.s32.totalorder 0, 0
  // Predicated region
  $region10: #{down_conv_block.2} parent=0 // pred_check
    %p15 = pneg %p14
  $region11: #{down_conv_block.2} parent=0 // pred_check_branch
    %17 = sbr.rel (%p15) target = $region13
  $region12: #{down_conv_block.2} parent=0 // pred_region
    %18 = vst [vmem:[#allocation2] sm:$0xff] 0.0
    %19 = vst [vmem:[#allocation2 + $0x8] sm:$0xff] 0.0
    %20 = vst [vmem:[#allocation2 + $0x10] sm:$0xff] 0.0
    %21 = vst [vmem:[#allocation2 + $0x18] sm:$0xff] 0.0
    %22 = vst [vmem:[#allocation2 + $0x20] sm:$0xff] 0.0
    %23 = vst [vmem:[#allocation2 + $0x28] sm:$0xff] 0.0
    %24 = vst [vmem:[#allocation2 + $0x30] sm:$0xff] 0.0
    %25 = vst [vmem:[#allocation2 + $0x38] sm:$0xff] 0.0
    %26 = vst [vmem:[#allocation2 + $0x40] sm:$0xff] 0.0
    %27 = vst [vmem:[#allocation2 + $0x48] sm:$0xff] 0.0
    %28 = vst [vmem:[#allocation2 + $0x50] sm:$0xff] 0.0
    %29 = vst [vmem:[#allocation2 + $0x58] sm:$0xff] 0.0
    %30 = vst [vmem:[#allocation2 + $0x60] sm:$0xff] 0.0
    %31 = vst [vmem:[#allocation2 + $0x68] sm:$0xff] 0.0
    %32 = vst [vmem:[#allocation2 + $0x70] sm:$0xff] 0.0
    %33 = vst [vmem:[#allocation2 + $0x78] sm:$0xff] 0.0
  $region13: #{down_conv_block.2} parent=0 // pred_fallthru
    _
  %v34 = vld [vmem:[#allocation2] sm:$0xff]
  %v35 = vld [vmem:[#allocation2 + $0x8] sm:$0xff]
  %v36 = vld [vmem:[#allocation2 + $0x10] sm:$0xff]
  %v37 = vld [vmem:[#allocation2 + $0x18] sm:$0xff]
  %v38 = vld [vmem:[#allocation2 + $0x20] sm:$0xff]
  %v39 = vld [vmem:[#allocation2 + $0x28] sm:$0xff]
  %v40 = vld [vmem:[#allocation2 + $0x30] sm:$0xff]
  %v41 = vld [vmem:[#allocation2 + $0x38] sm:$0xff]
  %v42 = vld [vmem:[#allocation2 + $0x40] sm:$0xff]
  %v43 = vld [vmem:[#allocation2 + $0x48] sm:$0xff]
  %v44 = vld [vmem:[#allocation2 + $0x50] sm:$0xff]
  %v45 = vld [vmem:[#allocation2 + $0x58] sm:$0xff]
  %v46 = vld [vmem:[#allocation2 + $0x60] sm:$0xff]
  %v47 = vld [vmem:[#allocation2 + $0x68] sm:$0xff]
  %v48 = vld [vmem:[#allocation2 + $0x70] sm:$0xff]
  %v49 = vld [vmem:[#allocation2 + $0x78] sm:$0xff]
  %v50 = vld [vmem:[%s0] sm:$0xf]
  %v51 = vld [vmem:[%s0 + $0x4] sm:$0xf]
  %v52 = vld [vmem:[%s0 + $0x8] sm:$0xf]
  %v53 = vld [vmem:[%s0 + $0xc] sm:$0xf]
  %v54 = vld [vmem:[%s0 + $0x10] sm:$0xf]
  %v55 = vld [vmem:[%s0 + $0x14] sm:$0xf]
  %v56 = vld [vmem:[%s0 + $0x18] sm:$0xf]
  %v57 = vld [vmem:[%s0 + $0x1c] sm:$0xf]
  %v58 = vld [vmem:[%s0 + $0x20] sm:$0xf]
  %v59 = vld [vmem:[%s0 + $0x24] sm:$0xf]
  %v60 = vld [vmem:[%s0 + $0x28] sm:$0xf]
  %v61 = vld [vmem:[%s0 + $0x2c] sm:$0xf]
  %v62 = vld [vmem:[%s0 + $0x30] sm:$0xf]
  %v63 = vld [vmem:[%s0 + $0x34] sm:$0xf]
  %v64 = vld [vmem:[%s0 + $0x38] sm:$0xf]
  %v65 = vld [vmem:[%s0 + $0x3c] sm:$0xf]
  %v66 = vld [vmem:[%s1] sm:$0xf]
  %v67 = vld [vmem:[%s1 + $0x4] sm:$0xf]
  %v68 = vld [vmem:[%s1 + $0x8] sm:$0xf]
  %v69 = vld [vmem:[%s1 + $0xc] sm:$0xf]
  %v70 = vld [vmem:[%s1 + $0x10] sm:$0x3]
  %v87 = vunpack.c.l.b16 %v50
  %v88 = vunpack.c.l.b16 %v51
  %v89 = vunpack.c.l.b16 %v52
  %v90 = vunpack.c.l.b16 %v53
  %v91 = vunpack.c.l.b16 %v54
  %v92 = vunpack.c.l.b16 %v55
  %v93 = vunpack.c.l.b16 %v56
  %v94 = vunpack.c.l.b16 %v57
  %v95 = vunpack.c.l.b16 %v58
  %v96 = vunpack.c.l.b16 %v59
  %v97 = vunpack.c.l.b16 %v60
  %v98 = vunpack.c.l.b16 %v61
  %v99 = vunpack.c.l.b16 %v62
  %v100 = vunpack.c.l.b16 %v63
  %v101 = vunpack.c.l.b16 %v64
  %v102 = vunpack.c.l.b16 %v65
  %v103 = vpack.c.b16 %v88, %v87
  %v104 = vpack.c.b16 %v90, %v89
  %v105 = vpack.c.b16 %v92, %v91
  %v106 = vpack.c.b16 %v94, %v93
  %v107 = vpack.c.b16 %v96, %v95
  %v108 = vpack.c.b16 %v98, %v97
  %v109 = vpack.c.b16 %v100, %v99
  %v110 = vpack.c.b16 %v102, %v101
  %v116 = vunpack.c.l.b16 %v66
  %v117 = vunpack.c.l.b16 %v67
  %v118 = vunpack.c.l.b16 %v68
  %v119 = vunpack.c.l.b16 %v69
  %v120 = vunpack.c.l.b16 %v70
  %v121 = vpack.c.b16 %v117, %v116
  %v122 = vpack.c.b16 %v119, %v118
  %v123 = vpack.c.b16 %v120, %v120
  %vm126 = vcmask 293888
  %v128 = vsel %vm126, %v103, 0
  %v131 = vsel %vm126, %v104, 0
  %v134 = vsel %vm126, %v105, 0
  %v137 = vsel %vm126, %v106, 0
  %v140 = vsel %vm126, %v107, 0
  %v143 = vsel %vm126, %v108, 0
  %v146 = vsel %vm126, %v109, 0
  %v149 = vsel %vm126, %v110, 0
  %vm151 = vcmask 1041408
  %v153 = vsel %vm151, %v123, 0
  %155 = vmatprep.subr.bf16.mxu0 0
  %156 = vmatpush1.bf16.msra.mxu0 0
  %157 = vmatprep.subr.bf16.mxu0 0
  %158 = vmatpush1.bf16.msra.mxu0 0
  %159 = vmatprep.subr.bf16.mxu0 0
  %160 = vmatpush1.bf16.msra.mxu0 0
  %161 = vmatprep.subr.bf16.mxu0 0
  %162 = vmatpush1.bf16.msra.mxu0 0
  %163 = vmatprep.subr.bf16.mxu0 0
  %164 = vmatpush1.bf16.msra.mxu0 0
  %165 = vmatprep.subr.bf16.mxu0 0
  %166 = vmatpush1.bf16.msra.mxu0 %v153
  %167 = vmatprep.subr.bf16.mxu0 0
  %168 = vmatpush1.bf16.msra.mxu0 %v122
  %169 = vmatprep.subr.bf16.mxu0 0
  %170 = vmatpush1.bf16.msra.mxu0 %v121
  %171 = vmatprep.subr.bf16.mxu0 0
  %172 = vmatpush2.bf16.msra.mxu0 0
  %173 = vmatprep.subr.bf16.mxu0 0
  %174 = vmatpush2.bf16.msra.mxu0 0
  %175 = vmatprep.subr.bf16.mxu0 0
  %176 = vmatpush2.bf16.msra.mxu0 0
  %177 = vmatprep.subr.bf16.mxu0 0
  %178 = vmatpush2.bf16.msra.mxu0 0
  %179 = vmatprep.subr.bf16.mxu0 0
  %180 = vmatpush2.bf16.msra.mxu0 0
  %181 = vmatprep.subr.bf16.mxu0 0
  %182 = vmatpush2.bf16.msra.mxu0 0
  %183 = vmatprep.subr.bf16.mxu0 0
  %184 = vmatpush2.bf16.msra.mxu0 0
  %185 = vmatprep.subr.bf16.mxu0 0
  %186 = vmatpush2.bf16.msra.mxu0 0
  %187 = vmatprep.mubr.bf16.mxu0 0
  %188 = vmatmul.mubr.bf16.gmra.mxu0 %v128
  %v189 = vpop.f32.mrf.mxu0
  %v190 = vadd.f32 0.0, %v189
  %v191 = vpop.f32.mrf.mxu0
  %v192 = vpop.f32.mrf.mxu0
  %v193 = vadd.f32 0.0, %v192
  %v194 = vpop.f32.mrf.mxu0
  %195 = vmatprep.mubr.bf16.mxu0 0
  %196 = vmatmul.mubr.bf16.gmra.mxu0 %v131
  %v197 = vpop.f32.mrf.mxu0
  %v198 = vadd.f32 0.0, %v197
  %v199 = vpop.f32.mrf.mxu0
  %v200 = vpop.f32.mrf.mxu0
  %v201 = vadd.f32 0.0, %v200
  %v202 = vpop.f32.mrf.mxu0
  %203 = vmatprep.mubr.bf16.mxu0 0
  %204 = vmatmul.mubr.bf16.gmra.mxu0 %v134
  %v205 = vpop.f32.mrf.mxu0
  %v206 = vadd.f32 0.0, %v205
  %v207 = vpop.f32.mrf.mxu0
  %v208 = vpop.f32.mrf.mxu0
  %v209 = vadd.f32 0.0, %v208
  %v210 = vpop.f32.mrf.mxu0
  %211 = vmatprep.mubr.bf16.mxu0 0
  %212 = vmatmul.mubr.bf16.gmra.mxu0 %v137
  %v213 = vpop.f32.mrf.mxu0
  %v214 = vadd.f32 0.0, %v213
  %v215 = vpop.f32.mrf.mxu0
  %v216 = vpop.f32.mrf.mxu0
  %v217 = vadd.f32 0.0, %v216
  %v218 = vpop.f32.mrf.mxu0
  %219 = vmatprep.mubr.bf16.mxu0 0
  %220 = vmatmul.mubr.bf16.gmra.mxu0 %v140
  %v221 = vpop.f32.mrf.mxu0
  %v222 = vadd.f32 0.0, %v221
  %v223 = vpop.f32.mrf.mxu0
  %v224 = vpop.f32.mrf.mxu0
  %v225 = vadd.f32 0.0, %v224
  %v226 = vpop.f32.mrf.mxu0
  %227 = vmatprep.mubr.bf16.mxu0 0
  %228 = vmatmul.mubr.bf16.gmra.mxu0 %v143
  %v229 = vpop.f32.mrf.mxu0
  %v230 = vadd.f32 0.0, %v229
  %v231 = vpop.f32.mrf.mxu0
  %v232 = vpop.f32.mrf.mxu0
  %v233 = vadd.f32 0.0, %v232
  %v234 = vpop.f32.mrf.mxu0
  %235 = vmatprep.mubr.bf16.mxu0 0
  %236 = vmatmul.mubr.bf16.gmra.mxu0 %v146
  %v237 = vpop.f32.mrf.mxu0
  %v238 = vadd.f32 0.0, %v237
  %v239 = vpop.f32.mrf.mxu0
  %v240 = vpop.f32.mrf.mxu0
  %v241 = vadd.f32 0.0, %v240
  %v242 = vpop.f32.mrf.mxu0
  %243 = vmatprep.mubr.bf16.mxu0 0
  %244 = vmatmul.mubr.bf16.gmra.mxu0 %v149
  %v245 = vpop.f32.mrf.mxu0
  %v246 = vadd.f32 0.0, %v245
  %v247 = vpop.f32.mrf.mxu0
  %v248 = vpop.f32.mrf.mxu0
  %v249 = vadd.f32 0.0, %v248
  %v250 = vpop.f32.mrf.mxu0
  %251 = vdwg.mxu0
  %v252 = vadd.f32 %v34, %v190
  %v253 = vadd.f32 %v35, %v193
  %v254 = vadd.f32 %v36, %v198
  %v255 = vadd.f32 %v37, %v201
  %v256 = vadd.f32 %v38, %v206
  %v257 = vadd.f32 %v39, %v209
  %v258 = vadd.f32 %v40, %v214
  %v259 = vadd.f32 %v41, %v217
  %v260 = vadd.f32 %v42, %v222
  %v261 = vadd.f32 %v43, %v225
  %v262 = vadd.f32 %v44, %v230
  %v263 = vadd.f32 %v45, %v233
  %v264 = vadd.f32 %v46, %v238
  %v265 = vadd.f32 %v47, %v241
  %v266 = vadd.f32 %v48, %v246
  %v267 = vadd.f32 %v49, %v249
  %268 = vst [vmem:[#allocation2] sm:$0xff] %v252
  %269 = vst [vmem:[#allocation2 + $0x8] sm:$0xff] %v253
  %270 = vst [vmem:[#allocation2 + $0x10] sm:$0xff] %v254
  %271 = vst [vmem:[#allocation2 + $0x18] sm:$0xff] %v255
  %272 = vst [vmem:[#allocation2 + $0x20] sm:$0xff] %v256
  %273 = vst [vmem:[#allocation2 + $0x28] sm:$0xff] %v257
  %274 = vst [vmem:[#allocation2 + $0x30] sm:$0xff] %v258
  %275 = vst [vmem:[#allocation2 + $0x38] sm:$0xff] %v259
  %276 = vst [vmem:[#allocation2 + $0x40] sm:$0xff] %v260
  %277 = vst [vmem:[#allocation2 + $0x48] sm:$0xff] %v261
  %278 = vst [vmem:[#allocation2 + $0x50] sm:$0xff] %v262
  %279 = vst [vmem:[#allocation2 + $0x58] sm:$0xff] %v263
  %280 = vst [vmem:[#allocation2 + $0x60] sm:$0xff] %v264
  %281 = vst [vmem:[#allocation2 + $0x68] sm:$0xff] %v265
  %282 = vst [vmem:[#allocation2 + $0x70] sm:$0xff] %v266
  %283 = vst [vmem:[#allocation2 + $0x78] sm:$0xff] %v267
  // Predicated region
  $region14: #{down_conv_block.2} parent=0 // pred_check
    %p284 = pneg %p14
  $region15: #{down_conv_block.2} parent=0 // pred_check_branch
    %286 = sbr.rel (%p284) target = $region17
  $region16: #{down_conv_block.2} parent=0 // pred_region
    %v287 = vld [vmem:[#allocation2] sm:$0xff]
    %v288 = vld [vmem:[#allocation2 + $0x8] sm:$0xff]
    %v289 = vld [vmem:[#allocation2 + $0x10] sm:$0xff]
    %v290 = vld [vmem:[#allocation2 + $0x18] sm:$0xff]
    %v291 = vld [vmem:[#allocation2 + $0x20] sm:$0xff]
    %v292 = vld [vmem:[#allocation2 + $0x28] sm:$0xff]
    %v293 = vld [vmem:[#allocation2 + $0x30] sm:$0xff]
    %v294 = vld [vmem:[#allocation2 + $0x38] sm:$0xff]
    %v295 = vld [vmem:[#allocation2 + $0x40] sm:$0xff]
    %v296 = vld [vmem:[#allocation2 + $0x48] sm:$0xff]
    %v297 = vld [vmem:[#allocation2 + $0x50] sm:$0xff]
    %v298 = vld [vmem:[#allocation2 + $0x58] sm:$0xff]
    %v299 = vld [vmem:[#allocation2 + $0x60] sm:$0xff]
    %v300 = vld [vmem:[#allocation2 + $0x68] sm:$0xff]
    %v301 = vld [vmem:[#allocation2 + $0x70] sm:$0xff]
    %v302 = vld [vmem:[#allocation2 + $0x78] sm:$0xff]
    %303 = vst [vmem:[%s2] sm:$0xff] %v287
    %304 = vst [vmem:[%s2 + $0x8] sm:$0xff] %v288
    %305 = vst [vmem:[%s2 + $0x10] sm:$0xff] %v289
    %306 = vst [vmem:[%s2 + $0x18] sm:$0xff] %v290
    %307 = vst [vmem:[%s2 + $0x20] sm:$0xff] %v291
    %308 = vst [vmem:[%s2 + $0x28] sm:$0xff] %v292
    %309 = vst [vmem:[%s2 + $0x30] sm:$0xff] %v293
    %310 = vst [vmem:[%s2 + $0x38] sm:$0xff] %v294
    %311 = vst [vmem:[%s2 + $0x40] sm:$0xff] %v295
    %312 = vst [vmem:[%s2 + $0x48] sm:$0xff] %v296
    %313 = vst [vmem:[%s2 + $0x50] sm:$0xff] %v297
    %314 = vst [vmem:[%s2 + $0x58] sm:$0xff] %v298
    %315 = vst [vmem:[%s2 + $0x60] sm:$0xff] %v299
    %316 = vst [vmem:[%s2 + $0x68] sm:$0xff] %v300
    %317 = vst [vmem:[%s2 + $0x70] sm:$0xff] %v301
    %318 = vst [vmem:[%s2 + $0x78] sm:$0xff] %v302
    %319 = vst [vmem:[%s3] sm:$0xff] 0.0
    %v320 = vadd.f32 %v287, %v288
    %v321 = vadd.f32 %v320, %v289
    %v322 = vadd.f32 %v321, %v290
    %v323 = vadd.f32 %v322, %v291
    %v324 = vadd.f32 %v323, %v292
    %v325 = vadd.f32 %v324, %v293
    %v326 = vadd.f32 %v325, %v294
    %v327 = vadd.f32 %v326, %v295
    %v328 = vadd.f32 %v327, %v296
    %v329 = vadd.f32 %v328, %v297
    %v330 = vadd.f32 %v329, %v298
    %v331 = vadd.f32 %v330, %v299
    %v332 = vadd.f32 %v331, %v300
    %v333 = vadd.f32 %v332, %v301
    %v334 = vadd.f32 %v333, %v302
    %v335 = vrot.slane %v334, 4
    %v336 = vadd.f32 %v334, %v335
    %v337 = vrot.slane %v336, 2
    %v338 = vadd.f32 %v336, %v337
    %v339 = vrot.slane %v338, 1
    %v340 = vadd.f32 %v338, %v339
    %341 = vst [vmem:[%s3] sm:$0x1] %v340
    %v342 = vmul.f32 %v287, %v287
    %v343 = vmul.f32 %v288, %v288
    %v344 = vmul.f32 %v289, %v289
    %v345 = vmul.f32 %v290, %v290
    %v346 = vmul.f32 %v291, %v291
    %v347 = vmul.f32 %v292, %v292
    %v348 = vmul.f32 %v293, %v293
    %v349 = vmul.f32 %v294, %v294
    %v350 = vmul.f32 %v295, %v295
    %v351 = vmul.f32 %v296, %v296
    %v352 = vmul.f32 %v297, %v297
    %v353 = vmul.f32 %v298, %v298
    %v354 = vmul.f32 %v299, %v299
    %v355 = vmul.f32 %v300, %v300
    %v356 = vmul.f32 %v301, %v301
    %v357 = vmul.f32 %v302, %v302
    %v358 = vadd.f32 %v342, %v343
    %v359 = vadd.f32 %v358, %v344
    %v360 = vadd.f32 %v359, %v345
    %v361 = vadd.f32 %v360, %v346
    %v362 = vadd.f32 %v361, %v347
    %v363 = vadd.f32 %v362, %v348
    %v364 = vadd.f32 %v363, %v349
    %v365 = vadd.f32 %v364, %v350
    %v366 = vadd.f32 %v365, %v351
    %v367 = vadd.f32 %v366, %v352
    %v368 = vadd.f32 %v367, %v353
    %v369 = vadd.f32 %v368, %v354
    %v370 = vadd.f32 %v369, %v355
    %v371 = vadd.f32 %v370, %v356
    %v372 = vadd.f32 %v371, %v357
    %v373 = vrot.slane %v372, 4
    %v374 = vadd.f32 %v372, %v373
    %v375 = vrot.slane %v374, 2
    %v376 = vadd.f32 %v374, %v375
    %v377 = vrot.slane %v376, 1
    %v378 = vadd.f32 %v376, %v377
    %379 = vst [vmem:[%s3 + $0x1] sm:$0x1] %v378
  $region17: #{down_conv_block.2} parent=0 // pred_fallthru
    _
  // Predicated region
  $region18: #{down_conv_block.2} parent=0 // pred_check
    _
  $region19: #{down_conv_block.2} parent=0 // pred_check_branch
    %381 = sbr.rel (0) target = $region21
  $region20: #{down_conv_block.2} parent=0 // pred_region
    _
  $region21: #{down_conv_block.2} parent=0 // pred_fallthru
    _
  // Predicated region
  $region22: #{down_conv_block.2} parent=0 // pred_check
    _
  $region23: #{down_conv_block.2} parent=0 // pred_check_branch
    %383 = sbr.rel (0) target = $region25
  $region24: #{down_conv_block.2} parent=0 // pred_region
    _
  $region25: #{down_conv_block.2} parent=0 // pred_fallthru
    _
  // Predicated region
  $region26: #{down_conv_block.2} parent=0 // pred_check
    _
  $region27: #{down_conv_block.2} parent=0 // pred_check_branch
    %385 = sbr.rel (0) target = $region29
  $region28: #{down_conv_block.2} parent=0 // pred_region
    _
  $region29: #{down_conv_block.2} parent=0 // pred_fallthru
    _
  // Predicated region
  $region30: #{down_conv_block.2} parent=0 // pred_check
    _
  $region31: #{down_conv_block.2} parent=0 // pred_check_branch
    %387 = sbr.rel (0) target = $region33
  $region32: #{down_conv_block.2} parent=0 // pred_region
    _
  $region33: #{down_conv_block.2} parent=0 // pred_fallthru
    _

</llo_original>
